<compile_context>
chip_gen: v7x
topology: tpu7x:2x2x1
jax: 0.10.0
libtpu: 0.0.40
codegen_flags: <defaults>
</compile_context>

<pallas_src>
import random
from collections import defaultdict, deque

import numpy as np
import jax
import jax.numpy as jnp
from jax.experimental import pallas as pl
from jax.experimental.pallas import tpu as pltpu

# Per-call working-set budget (double-buffered tiles).  Conservative: fits v5e's 16 MiB scoped
# VMEM default and v7x's 32 MiB scoped / 64 MiB physical VMEM with headroom.
_VMEM_BUDGET = 12 * 1024 * 1024


def _round_up(n, m):
    return ((n + m - 1) // m) * m


# ----------------------------- memory bank (host state) -----------------------------
class MemoryBank:
    def __init__(self, max_per_class=100):
        self.max_per_class = max_per_class
        self.class_to_embeddings = defaultdict(lambda: deque(maxlen=max_per_class))

    def add_samples(self, embeddings, labels):
        for emb, lbl in zip(np.asarray(embeddings), np.asarray(labels)):
            self.class_to_embeddings[int(lbl)].append(np.array(emb))

    def get_positive(self, class_label):
        if class_label in self.class_to_embeddings and len(self.class_to_embeddings[class_label]) > 0:
            return self.class_to_embeddings[class_label][0]
        return None


# ----------------------------- Stage A: per-candidate softmax stats -----------------------------
def _cand_stats_kernel(x_ref, lbl_ref, stats_ref):
    """Per-candidate row stats from a [TC, C] logits tile, packed lane-dense:
       lane 0: top1 prob = 1/sum(exp(x - max))   (exp at the argmax is exactly 1.0)
       lane 1: top2 prob = (2nd largest exp)/sum
       lane 2: argmax class index (as f32)
       lane 3: candidate label    (as f32, -1 for padding / out-of-range rows)
       The last candidate block may be ragged: rows beyond N carry garbage logits but their
       label lane is -1, which invalidates them downstream."""
    x = x_ref[...].astype(jnp.float32)                       # upcast after load (native-dtype DMA)
    tc, c = x.shape
    m = jnp.max(x, axis=-1, keepdims=True)                   # [TC, 1]
    e = jnp.exp(x - m)
    s = jnp.sum(e, axis=-1, keepdims=True)                   # [TC, 1]
    class_ids = jax.lax.broadcasted_iota(jnp.int32, (tc, c), 1)
    t1_idx = jnp.min(jnp.where(x == m, class_ids, c), axis=-1, keepdims=True)        # [TC, 1]
    top2_e = jnp.max(jnp.where(class_ids == t1_idx, -jnp.inf, e), axis=-1, keepdims=True)
    inv_s = 1.0 / s
    # Zero-fill once, then 4 narrow column stores (masked vst) instead of a 4-deep where chain.
    stats_ref[...] = jnp.zeros_like(stats_ref)
    stats_ref[:, 0:1] = inv_s
    stats_ref[:, 1:2] = top2_e * inv_s
    stats_ref[:, 2:3] = t1_idx.astype(jnp.float32)
    stats_ref[:, 3:4] = lbl_ref[...].astype(jnp.float32)


# ----------------------------- Stage B: hardest negative per anchor -----------------------------
def _make_hardest_kernel(tc, n_ctiles):
    """For each anchor i (lanes) pick argmax over all candidates j of
       h[j, i] = max_{k != label_i} softmax(x_j)[k], masked where label_j == label_i or label_j < 0.
       The full stats array is VMEM-resident; candidate tiles are looped inside the kernel so the
       stats are read from HBM exactly once."""

    def kernel(albl_ref, stats_ref, neg_ref):
        albl = albl_ref[...].astype(jnp.float32)             # [1, TA] anchor labels on lanes
        ta = albl.shape[1]

        def body(ci, carry):
            maxh, arg = carry
            base = pl.multiple_of(ci * tc, tc)
            st = stats_ref[pl.ds(base, tc), :]               # [tc, 128] (VMEM load only)
            top1_p = st[:, 0:1]
            top2_p = st[:, 1:2]
            t1_idx = st[:, 2:3]
            cand_lbl = st[:, 3:4]
            h = jnp.where(t1_idx == albl, top2_p, top1_p)    # [tc, ta]
            valid = jnp.logical_and(cand_lbl >= 0.0, cand_lbl != albl)
            h = jnp.where(valid, h, -jnp.inf)
            cand_ids = jax.lax.broadcasted_iota(jnp.int32, (tc, ta), 0) + ci * tc
            tile_max = jnp.max(h, axis=0, keepdims=True)     # [1, ta]
            tile_arg = jnp.min(jnp.where(h == tile_max, cand_ids, jnp.int32(2 ** 30)),
                               axis=0, keepdims=True)
            take_new = tile_max > maxh                       # strict '>' => earliest candidate wins ties
            arg = jnp.where(take_new, tile_arg, arg)
            maxh = jnp.where(take_new, tile_max, maxh)
            return maxh, arg

        init = (jnp.full((1, ta), -jnp.inf, dtype=jnp.float32),
                jnp.zeros((1, ta), dtype=jnp.int32))
        _, arg = jax.lax.fori_loop(0, n_ctiles, body, init)
        # Anchors for which every candidate is invalid keep arg == 0; the host glue never
        # consumes those anchors (no-negatives-in-batch check) — keep that invariant.
        neg_ref[...] = arg

    return kernel


def hardest_negative_indices(x, labels):
    """Device-side hardest negative for every anchor in the batch (min index on ties)."""
    n, c = x.shape
    itemsize = int(jnp.dtype(x.dtype).itemsize)
    assert c < (1 << 24)  # class ids / labels are carried exactly as f32 in the stats lanes

    # Stage-A candidate tile: 2*tc*C (double-buffered input) + 2*tc*128*4 (output) <= budget.
    tc = _VMEM_BUDGET // (2 * c * itemsize + 2 * 128 * 4)
    tc = max(8, min(512, (tc // 8) * 8))
    tc = min(tc, _round_up(n, 8))
    nc = _round_up(n, tc)

    lbl = labels.astype(jnp.int32)
    lbl_col = jnp.full((nc, 1), -1, jnp.int32).at[:n, 0].set(lbl)

    # Stage A: [nc, 128] lane-dense per-candidate stats.  x is NOT padded: the last block is
    # ragged and its out-of-range rows are masked downstream via the -1 label lane.
    stats = pl.pallas_call(
        _cand_stats_kernel,
        out_shape=jax.ShapeDtypeStruct((nc, 128), jnp.float32),
        grid_spec=pltpu.PrefetchScalarGridSpec(
            num_scalar_prefetch=0,
            grid=(nc // tc,),
            in_specs=[pl.BlockSpec((tc, c), lambda i: (i, 0)),
                      pl.BlockSpec((tc, 1), lambda i: (i, 0))],
            out_specs=pl.BlockSpec((tc, 128), lambda i: (i, 0))),
        compiler_params=pltpu.CompilerParams(dimension_semantics=("parallel",)),
        cost_estimate=pl.CostEstimate(flops=5 * nc * c, transcendentals=nc * c,
                                      bytes_accessed=n * c * itemsize + nc * 128 * 4 + nc * 4),
    )(x, lbl_col)

    # Stage B: anchors tiled on lanes ('parallel' axis, >=2 blocks once N > 512 for v7x's 2 TCs),
    # stats resident in VMEM (constant-index full block), candidate loop inside the kernel.
    ta = min(512, _round_up(n, 128))
    na = _round_up(n, ta)
    lbl_row = jnp.full((1, na), -1, jnp.int32).at[0, :n].set(lbl)
    n_ctiles = nc // tc

    neg = pl.pallas_call(
        _make_hardest_kernel(tc, n_ctiles),
        out_shape=jax.ShapeDtypeStruct((1, na), jnp.int32),
        grid_spec=pltpu.PrefetchScalarGridSpec(
            num_scalar_prefetch=0,
            grid=(na // ta,),
            in_specs=[pl.BlockSpec((1, ta), lambda a: (0, a)),
                      pl.BlockSpec((nc, 128), lambda a: (0, 0))],   # constant block: one DMA total
            out_specs=pl.BlockSpec((1, ta), lambda a: (0, a))),
        compiler_params=pltpu.CompilerParams(dimension_semantics=("parallel",)),
        cost_estimate=pl.CostEstimate(flops=10 * na * nc, transcendentals=0,
                                      bytes_accessed=nc * 128 * 4 + na * 8 + n * 4),
    )(lbl_row, stats)

    return neg[0, :n]


# ----------------------------- Stage C: batched summed-logit cross entropy -----------------------------
def _make_set_ce_kernel(inv_m):
    def kernel(xa_ref, xp_ref, xn_ref, tgt_ref, val_ref, out_ref, acc_ref):
        i = pl.program_id(0)

        @pl.when(i == 0)
        def _():
            acc_ref[...] = jnp.zeros_like(acc_ref)

        s = (xa_ref[...].astype(jnp.float32) + xp_ref[...].astype(jnp.float32)
             + xn_ref[...].astype(jnp.float32))                               # [TB, C]
        mx = jnp.max(s, axis=-1, keepdims=True)
        lse = mx + jnp.log(jnp.sum(jnp.exp(s - mx), axis=-1, keepdims=True))  # [TB, 1]
        cls = jax.lax.broadcasted_iota(jnp.int32, s.shape, 1)
        picked = jnp.sum(jnp.where(cls == tgt_ref[...], s, 0.0), axis=-1, keepdims=True)
        contrib = jnp.where(val_ref[...] > 0.0, lse - picked, 0.0)            # mask padded sets
        acc_ref[...] += jnp.sum(contrib, axis=0, keepdims=True)

        @pl.when(i == pl.num_programs(0) - 1)
        def _():
            out_ref[...] = acc_ref[...] * inv_m                               # mean over true m

    return kernel


def set_cross_entropy_fused(x, neg_for_anchor, aidx, pidx, ismb, tgt, mb_rows):
    """Pre-gather anchor/positive/negative row slabs on device, blend memory-bank positives,
       then run the batched summed-logit CE kernel (TB sets per grid step)."""
    n, c = x.shape
    m = int(aidx.shape[0])
    itemsize = int(jnp.dtype(x.dtype).itemsize)

    # Set tile: 3 double-buffered (TB, C) inputs under the VMEM budget; TB multiple of 8.
    tb = _VMEM_BUDGET // (3 * 2 * c * itemsize)
    tb = max(8, min(256, (tb // 8) * 8))
    tb = min(tb, _round_up(m, 8))
    mp = _round_up(m, tb)
    pad = mp - m

    # Pad the tiny index/metadata arrays (host side) so every block is full; padded sets are
    # masked in-kernel and the mean divides by the true m.
    aidx_p = np.concatenate([aidx, np.zeros(pad, np.int32)]).astype(np.int32)
    pidx_p = np.concatenate([pidx, np.zeros(pad, np.int32)]).astype(np.int32)
    ismb_p = np.concatenate([ismb, np.zeros(pad, np.int32)]).astype(np.int32)
    tgt_p = np.concatenate([tgt, np.zeros(pad, np.int32)]).astype(np.int32)
    valid_p = np.concatenate([np.ones(m, np.float32), np.zeros(pad, np.float32)])
    mb_full = np.zeros((mp, c), np.float32)
    mb_full[:m] = mb_rows

    # Device-side gathers (negative indices come straight from the stage-B kernel output).
    nidx_p = jnp.take(neg_for_anchor, jnp.asarray(aidx_p))
    xa = jnp.take(x, jnp.asarray(aidx_p), axis=0)
    xp = jnp.take(x, jnp.asarray(pidx_p), axis=0)
    xn = jnp.take(x, nidx_p, axis=0)
    xp = jnp.where(jnp.asarray(ismb_p)[:, None] > 0, jnp.asarray(mb_full, dtype=x.dtype), xp)

    tgt_col = jnp.asarray(tgt_p).reshape(mp, 1)
    val_col = jnp.asarray(valid_p).reshape(mp, 1)

    out = pl.pallas_call(
        _make_set_ce_kernel(1.0 / float(m)),
        out_shape=jax.ShapeDtypeStruct((1, 1), jnp.float32),
        grid_spec=pltpu.PrefetchScalarGridSpec(
            num_scalar_prefetch=0,
            grid=(mp // tb,),
            in_specs=[pl.BlockSpec((tb, c), lambda i: (i, 0)),
                      pl.BlockSpec((tb, c), lambda i: (i, 0)),
                      pl.BlockSpec((tb, c), lambda i: (i, 0)),
                      pl.BlockSpec((tb, 1), lambda i: (i, 0)),
                      pl.BlockSpec((tb, 1), lambda i: (i, 0))],
            out_specs=pl.BlockSpec((1, 1), lambda i: (0, 0)),
            scratch_shapes=[pltpu.VMEM((1, 1), jnp.float32)]),
        compiler_params=pltpu.CompilerParams(dimension_semantics=("arbitrary",)),
        cost_estimate=pl.CostEstimate(flops=6 * mp * c, transcendentals=mp * c,
                                      bytes_accessed=3 * mp * c * itemsize + mp * 8 + 4),
    )(xa, xp, xn, tgt_col, val_col)
    return out[0, 0]


# ----------------------------- OkoSetLossHardK forward (glue + kernels) -----------------------------
def oko_set_loss_hard_k(x, target, embeddings, memory_bank, hardness_method="prob"):
    # TODO(synk): distributed all_gather_with_grad path not implemented (single device, world_size=1).
    assert hardness_method == "prob"
    del embeddings  # unused by the 'prob' hardness measure
    all_x, all_target = x, target
    n, c = all_x.shape
    labels = [int(v) for v in np.asarray(all_target)]        # tiny host transfer (labels only)

    label_to_indices = {}
    for idx, lbl in enumerate(labels):
        label_to_indices.setdefault(lbl, []).append(idx)

    # Hot path 1 (Pallas): hardest negative per anchor — result stays on device (no host sync).
    neg_for_anchor = hardest_negative_indices(all_x, all_target)

    anchor_indices, positive_indices = [], []
    for anchor_idx in range(n):
        anchor_label = labels[anchor_idx]
        positive_pool = [i for i in label_to_indices[anchor_label] if i != anchor_idx]
        if n - len(label_to_indices[anchor_label]) == 0:      # no negatives in batch
            continue
        if len(positive_pool) == 0:
            if memory_bank.get_positive(anchor_label) is None:
                continue
            anchor_indices.append(anchor_idx)
            positive_indices.append(-1)
        else:
            anchor_indices.append(anchor_idx)
            positive_indices.append(random.choice(positive_pool))

    if not anchor_indices:
        memory_bank.add_samples(x, target)
        return jnp.float32(0.0)

    m = len(anchor_indices)
    aidx = np.asarray(anchor_indices, np.int32)
    pidx = np.asarray(positive_indices, np.int32)
    ismb = (pidx < 0).astype(np.int32)
    pidx_clamped = np.maximum(pidx, 0).astype(np.int32)
    tgt = np.asarray([labels[a] for a in anchor_indices], np.int32)

    mb_rows = np.zeros((m, c), np.float32)
    for si, (a, p) in enumerate(zip(anchor_indices, positive_indices)):
        if p < 0:
            mb_rows[si] = np.asarray(memory_bank.get_positive(labels[a]), np.float32)

    # Hot path 2 (Pallas): batched gather + summed-logit cross entropy (mean over m sets).
    loss = set_cross_entropy_fused(all_x, neg_for_anchor, aidx, pidx_clamped, ismb, tgt, mb_rows)

    memory_bank.add_samples(x, target)
    return loss


# ----------------------------- pure-numpy reference -----------------------------
def reference_loss(x, target):
    x = np.asarray(x, dtype=np.float64)
    labels = [int(v) for v in np.asarray(target)]
    N, _ = x.shape
    label_to_indices = {}
    for i, l in enumerate(labels):
        label_to_indices.setdefault(l, []).append(i)
    e = np.exp(x - x.max(axis=-1, keepdims=True))
    probs = e / e.sum(axis=-1, keepdims=True)
    per_set = []
    for a in range(N):
        al = labels[a]
        pos_pool = [i for i in label_to_indices[al] if i != a]
        neg_pool = [i for i in range(N) if labels[i] != al]
        if len(neg_pool) == 0:
            continue
        if len(pos_pool) == 0:
            continue  # fresh memory bank -> no positive available -> skip
        p = random.choice(pos_pool)
        pe = probs[neg_pool].copy()
        pe[:, al] = -np.inf
        nneg = neg_pool[int(np.argmax(pe.max(axis=-1)))]
        s = x[a] + x[p] + x[nneg]
        lse = np.log(np.exp(s - s.max()).sum()) + s.max()
        per_set.append(lse - s[al])
    if not per_set:
        return 0.0
    return float(np.mean(per_set))


if __name__ == "__main__":
    key = jax.random.PRNGKey(0)
    kx, kt, ke = jax.random.split(key, 3)
    N, C, D = 10, 128, 16          # N not a multiple of 8 -> exercises ragged-block masking paths
    x = jax.random.normal(kx, (N, C), dtype=jnp.float32)
    target = jax.random.randint(kt, (N,), 0, 4, dtype=jnp.int32)
    embeddings = jax.random.normal(ke, (N, D), dtype=jnp.float32)

    mb = MemoryBank(max_per_class=100)

    random.seed(0)
    loss = oko_set_loss_hard_k(x, target, embeddings, mb)
    loss = jax.block_until_ready(loss)

    random.seed(0)
    ref = reference_loss(np.asarray(x), np.asarray(target))
    if not np.isclose(float(loss), float(ref), rtol=1e-4, atol=1e-5):
        raise AssertionError(f"mismatch: pallas={float(loss)} ref={ref}")

    print("KERNEL_OK")
</pallas_src>

<mosaic_0001>
module attributes {stable_mosaic.version = 11 : i64} {
  func.func @_cand_stats_kernel(%arg0: i32, %arg1: memref<16x128xf32, #tpu.memory_space<vmem>>, %arg2: memref<16x1xi32, #tpu.memory_space<vmem>>, %arg3: memref<16x128xf32, #tpu.memory_space<vmem>>) attributes {dimension_semantics = [#tpu.dimension_semantics<parallel>], iteration_bounds = array<i64: 1>, scalar_prefetch = 0 : i64, scratch_operands = 0 : i64, tpu.core_type = #tpu.core_type<tc>, window_params = [{transform_indices = @transform_0, window_bounds = array<i64: 16, 128>}, {transform_indices = @transform_1, window_bounds = array<i64: 16, 1>}, {transform_indices = @transform_2, window_bounds = array<i64: 16, 128>}]} {
    %c0 = arith.constant 0 : index
    %c0_0 = arith.constant 0 : index
    %0 = vector.load %arg1[%c0, %c0_0] : memref<16x128xf32, #tpu.memory_space<vmem>>, vector<16x128xf32>
    %cst = arith.constant dense<0xFF800000> : vector<16xf32>
    %1 = vector.multi_reduction <maximumf>, %0, %cst [1] : vector<16x128xf32> to vector<16xf32>
    %2 = vector.shape_cast %1 : vector<16xf32> to vector<16x1xf32>
    %3 = vector.broadcast %2 : vector<16x1xf32> to vector<16x128xf32>
    %4 = arith.subf %0, %3 : vector<16x128xf32>
    %5 = math.exp %4 : vector<16x128xf32>
    %cst_1 = arith.constant dense<0.000000e+00> : vector<16xf32>
    %6 = vector.multi_reduction <add>, %5, %cst_1 [1] : vector<16x128xf32> to vector<16xf32>
    %7 = vector.shape_cast %6 : vector<16xf32> to vector<16x1xf32>
    %8 = tpu.iota {dimensions = array<i32: 1>} : vector<16x128xi32>
    %9 = vector.broadcast %2 : vector<16x1xf32> to vector<16x128xf32>
    %10 = arith.cmpf oeq, %0, %9 : vector<16x128xf32>
    %c128_i32 = arith.constant 128 : i32
    %11 = vector.broadcast %c128_i32 : i32 to vector<16x128xi32>
    %12 = arith.select %10, %8, %11 : vector<16x128xi1>, vector<16x128xi32>
    %cst_2 = arith.constant dense<2147483647> : vector<16xi32>
    %13 = vector.multi_reduction <minsi>, %12, %cst_2 [1] : vector<16x128xi32> to vector<16xi32>
    %14 = vector.shape_cast %13 : vector<16xi32> to vector<16x1xi32>
    %15 = vector.broadcast %14 : vector<16x1xi32> to vector<16x128xi32>
    %16 = arith.cmpi eq, %8, %15 : vector<16x128xi32>
    %cst_3 = arith.constant 0xFF800000 : f32
    %17 = vector.broadcast %cst_3 : f32 to vector<16x128xf32>
    %18 = arith.select %16, %17, %5 : vector<16x128xi1>, vector<16x128xf32>
    %cst_4 = arith.constant dense<0xFF800000> : vector<16xf32>
    %19 = vector.multi_reduction <maximumf>, %18, %cst_4 [1] : vector<16x128xf32> to vector<16xf32>
    %20 = vector.shape_cast %19 : vector<16xf32> to vector<16x1xf32>
    %cst_5 = arith.constant 1.000000e+00 : f32
    %21 = vector.broadcast %cst_5 : f32 to vector<16x1xf32>
    %22 = arith.divf %21, %7 : vector<16x1xf32>
    %cst_6 = arith.constant 0.000000e+00 : f32
    %23 = vector.broadcast %cst_6 : f32 to vector<16x128xf32>
    %c0_7 = arith.constant 0 : index
    %c0_8 = arith.constant 0 : index
    %24 = vector.load %arg3[%c0_7, %c0_8] : memref<16x128xf32, #tpu.memory_space<vmem>>, vector<16x128xf32>
    tpu.vector_store %arg3[%c0_7, %c0_8], %23 {strides = array<i32>} : memref<16x128xf32, #tpu.memory_space<vmem>>, vector<16x128xf32>,
    %c0_9 = arith.constant 0 : index
    %c0_10 = arith.constant 0 : index
    %25 = vector.load %arg3[%c0_9, %c0_10] : memref<16x128xf32, #tpu.memory_space<vmem>>, vector<16x1xf32>
    tpu.vector_store %arg3[%c0_9, %c0_10], %22 {strides = array<i32>} : memref<16x128xf32, #tpu.memory_space<vmem>>, vector<16x1xf32>,
    %26 = arith.mulf %20, %22 : vector<16x1xf32>
    %c0_11 = arith.constant 0 : index
    %c1 = arith.constant 1 : index
    %27 = vector.load %arg3[%c0_11, %c1] : memref<16x128xf32, #tpu.memory_space<vmem>>, vector<16x1xf32>
    tpu.vector_store %arg3[%c0_11, %c1], %26 {strides = array<i32>} : memref<16x128xf32, #tpu.memory_space<vmem>>, vector<16x1xf32>,
    %28 = arith.sitofp %14 : vector<16x1xi32> to vector<16x1xf32>
    %c0_12 = arith.constant 0 : index
    %c2 = arith.constant 2 : index
    %29 = vector.load %arg3[%c0_12, %c2] : memref<16x128xf32, #tpu.memory_space<vmem>>, vector<16x1xf32>
    tpu.vector_store %arg3[%c0_12, %c2], %28 {strides = array<i32>} : memref<16x128xf32, #tpu.memory_space<vmem>>, vector<16x1xf32>,
    %c0_13 = arith.constant 0 : index
    %c0_14 = arith.constant 0 : index
    %30 = vector.load %arg2[%c0_13, %c0_14] : memref<16x1xi32, #tpu.memory_space<vmem>>, vector<16x1xi32>
    %31 = arith.sitofp %30 : vector<16x1xi32> to vector<16x1xf32>
    %c0_15 = arith.constant 0 : index
    %c3 = arith.constant 3 : index
    %32 = vector.load %arg3[%c0_15, %c3] : memref<16x128xf32, #tpu.memory_space<vmem>>, vector<16x1xf32>
    tpu.vector_store %arg3[%c0_15, %c3], %31 {strides = array<i32>} : memref<16x128xf32, #tpu.memory_space<vmem>>, vector<16x1xf32>,
    return
  }
  func.func @transform_0(%arg0: i32) -> (i32, i32) {
    %c0_i32 = arith.constant 0 : i32
    %c0_i32_0 = arith.constant 0 : i32
    return %arg0, %c0_i32 : i32, i32
  }
  func.func @transform_1(%arg0: i32) -> (i32, i32) {
    %c0_i32 = arith.constant 0 : i32
    %c0_i32_0 = arith.constant 0 : i32
    return %arg0, %c0_i32 : i32, i32
  }
  func.func @transform_2(%arg0: i32) -> (i32, i32) {
    %c0_i32 = arith.constant 0 : i32
    %c0_i32_0 = arith.constant 0 : i32
    return %arg0, %c0_i32 : i32, i32
  }
}

</mosaic_0001>

<llo_original>
// kernel: tpu_custom_call.1
$region0: #{tpu_custom_call.1}
  #allocation0 [shape = 'u32[]', space=smem, size = 0x4, offset = 0x4, fixed_abs, tag = 'smem constant byte address 0x4 - core index']
  #allocation1 [shape = 'u32[144,128]{1,0:T(1,128)}', space=vmem, size = 0x12000, scoped, tag = 'internal scratch']
  %s0 = inlined_call_operand.vmem [shape: f32[10,128], index: 0, kind: input, shape index: {}]
  %s1 = inlined_call_operand.vmem [shape: s32[16,1], index: 1, kind: input, shape index: {}]
  %s2 = inlined_call_operand.hbm [shape: f32[16,128], index: 2, kind: output, shape index: {}]
  %s3 = sld [smem:[#allocation0]]
  $region18: #{tpu_custom_call.1} parent=0
    _
  %s5 = ssub.s32 1, %s3
  %s6 = scalar_select 0, %s5, %s3
  $region1: #{tpu_custom_call.1} parent=0
    #allocation2 [shape = 'u8[8192]{0}', space=vmem, size = 0x2000, scoped, tag = 'output window, operand 0, single buffered']
    #allocation3 [shape = 's32[1]{0}', space=sflag, size = 0x4, scoped, tag = 'scoped memory for tpu_custom_call.1']
    %7 = vsyncpa [#allocation3], 0
    // Predicated region
    $region2: #{tpu_custom_call.1} parent=1 // pred_check
      _
    $region3: #{tpu_custom_call.1} parent=1 // pred_check_branch
      %9 = sbr.rel (0) target = $region5
    $region4: #{tpu_custom_call.1} parent=1 // pred_region
      _
    $region5: #{tpu_custom_call.1} parent=1 // pred_fallthru
      _
    // Predicated region
    $region6: #{tpu_custom_call.1} parent=1 // pred_check
      _
    $region7: #{tpu_custom_call.1} parent=1 // pred_check_branch
      %11 = sbr.rel (0) target = $region9
    $region8: #{tpu_custom_call.1} parent=1 // pred_region
      _
    $region9: #{tpu_custom_call.1} parent=1 // pred_fallthru
      _
    %v12 = vld [vmem:[%s0] sm:$0xff]
    %v13 = vld [vmem:[%s0 + $0x8] sm:$0xff]
    %14 = vmax.xlane.f32.xlu0 %v12
    %v15 = vpop.xlane.xlu0 %14
    %16 = vmax.xlane.f32.xlu0 %v13
    %v17 = vpop.xlane.xlu0 %16
    %v18 = vsub.f32 %v12, %v15
    %v19 = vsub.f32 %v13, %v17
    %v20 = vmul.f32 %v18, 1.442695
    %v21 = vpow.pop %v20
    %v22 = vmul.f32 %v19, 1.442695
    %v23 = vpow.pop %v22
    %24 = vadd.xlane.f32.xlu0 %v21
    %v25 = vpop.xlane.xlu0 %24
    %26 = vadd.xlane.f32.xlu0 %v23
    %v27 = vpop.xlane.xlu0 %26
    %v28 = vlaneseq
    %v29 = vand.u32 %v28, 127
    %vm30 = vcmp.eq.f32.partialorder %v12, %v15
    %vm31 = vcmp.eq.f32.partialorder %v13, %v17
    %v32 = vsel %vm30, %v29, 128
    %v33 = vsel %vm31, %v29, 128
    %v34 = vand.u32 %v32, 65535
    %v35 = vshra.s32 %v32, 16
    %v36 = vcvt.s32.f32 %v34
    %v37 = vcvt.s32.f32 %v35
    %38 = vmin.xlane.f32.xlu0 %v37
    %v39 = vpop.xlane.xlu0 %38
    %vm40 = vcmp.eq.f32.partialorder %v37, %v39
    %v41 = vsel %vm40, %v36, inf
    %42 = vmin.xlane.f32.xlu0 %v41
    %v43 = vpop.xlane.xlu0 %42
    %v44 = vcvt.f32.s32 %v43
    %v45 = vcvt.f32.s32 %v39
    %v46 = vshll.u32 %v45, 16
    %v47 = vadd.s32 %v46, %v44
    %v48 = vand.u32 %v33, 65535
    %v49 = vshra.s32 %v33, 16
    %v50 = vcvt.s32.f32 %v48
    %v51 = vcvt.s32.f32 %v49
    %52 = vmin.xlane.f32.xlu0 %v51
    %v53 = vpop.xlane.xlu0 %52
    %vm54 = vcmp.eq.f32.partialorder %v51, %v53
    %v55 = vsel %vm54, %v50, inf
    %56 = vmin.xlane.f32.xlu0 %v55
    %v57 = vpop.xlane.xlu0 %56
    %v58 = vcvt.f32.s32 %v57
    %v59 = vcvt.f32.s32 %v53
    %v60 = vshll.u32 %v59, 16
    %v61 = vadd.s32 %v60, %v58
    %vm62 = vcmp.eq.s32.totalorder %v29, %v47
    %vm63 = vcmp.eq.s32.totalorder %v29, %v61
    %v64 = vsel %vm62, -inf, %v21
    %v65 = vsel %vm63, -inf, %v23
    %66 = vmax.xlane.f32.xlu0 %v64
    %v67 = vpop.xlane.xlu0 %66
    %68 = vmax.xlane.f32.xlu0 %v65
    %v69 = vpop.xlane.xlu0 %68
    %v70 = vrcp.pop %v25
    %v71 = vmul.f32 1.0, %v70
    %v72 = vrcp.pop %v27
    %v73 = vmul.f32 1.0, %v72
    %74 = vst [vmem:[#allocation2] sm:$0xff] 0.0
    %75 = vst [vmem:[#allocation2 + $0x8] sm:$0xff] 0.0
    %vm76 = vcmask 7168
    %77 = vst.msk [vmem:[#allocation2] sm:$0xff] %vm76, %v71
    %78 = vst.msk [vmem:[#allocation2 + $0x8] sm:$0xff] %vm76, %v73
    %v79 = vmul.f32 %v67, %v71
    %v80 = vmul.f32 %v69, %v73
    %vm81 = vcmask 15368
    %82 = vst.msk [vmem:[#allocation2] sm:$0xff] %vm81, %v79
    %83 = vst.msk [vmem:[#allocation2 + $0x8] sm:$0xff] %vm81, %v80
    %v84 = vcvt.s32.f32 %v47
    %v85 = vcvt.s32.f32 %v61
    %vm86 = vcmask 23568
    %87 = vst.msk [vmem:[#allocation2] sm:$0xff] %vm86, %v84
    %88 = vst.msk [vmem:[#allocation2 + $0x8] sm:$0xff] %vm86, %v85
    %v89 = vld [vmem:[%s1] sm:$0xff]
    %v90 = vld [vmem:[%s1 + $0x8] sm:$0xff]
    %v91 = vcvt.s32.f32 %v89
    %v92 = vcvt.s32.f32 %v90
    %95 = vrot.lane.b32.xlu0 %v91, 3
    %v96 = vpop.permute.xlu0 %95
    %97 = vrot.lane.b32.xlu0 %v92, 3
    %v98 = vpop.permute.xlu0 %97
    %vm101 = vcmask 31768
    %102 = vst.msk [vmem:[#allocation2] sm:$0xff] %vm101, %v96
    %103 = vst.msk [vmem:[#allocation2 + $0x8] sm:$0xff] %vm101, %v98
    // Predicated region
    $region10: #{tpu_custom_call.1} parent=1 // pred_check
      _
    $region11: #{tpu_custom_call.1} parent=1 // pred_check_branch
      %105 = sbr.rel (0) target = $region13
    $region12: #{tpu_custom_call.1} parent=1 // pred_region
      %s107 = ssub.s32 256, 256
      %108 = vsyncadd [#allocation3], %s107
      %s109 = sshll.u32 [#allocation2], 4
      %s110 = int_to_ptr.vmem [resolvable:$true] %s109
      %115 = dma.vmem_to_hbm [thread:$0]  %s110, 256, %s2, [#allocation3], 128, 128, 8
    $region13: #{tpu_custom_call.1} parent=1 // pred_fallthru
      _
    // Predicated region
    $region14: #{tpu_custom_call.1} parent=1 // pred_check
      _
    $region15: #{tpu_custom_call.1} parent=1 // pred_check_branch
      %117 = sbr.rel (0) target = $region17
    $region16: #{tpu_custom_call.1} parent=1 // pred_region
      %118 = dma.done [#allocation3], 256
    $region17: #{tpu_custom_call.1} parent=1 // pred_fallthru
      _
    %119 = vsyncpa [#allocation3], 1

</llo_original>
